<compile_context>
chip_gen: v5e
topology: v5e:2x2
jax: 0.10.0
libtpu: 0.0.40
codegen_flags: <defaults>
</compile_context>

<pallas_src>
import functools

import jax
import jax.numpy as jnp
from jax.experimental import pallas as pl
from jax.experimental.pallas import tpu as pltpu

EPS = 1e-5


def _conv_rows(x, w, n, c):
    """1x1 conv as VPU scalar*vector FMAs.

    x: (n*c, T) block with rows ordered (ni, ci).
    w: hoisted SMEM scalars, w[co][ci].
    Returns rows[ni][co] -> (1, T).
    """
    rows = []
    for ni in range(n):
        per_co = []
        for co in range(c):
            acc = w[co][0] * x[ni * c:ni * c + 1, :]
            for ci in range(1, c):
                acc = acc + w[co][ci] * x[ni * c + ci:ni * c + ci + 1, :]
            per_co.append(acc)
        rows.append(per_co)
    return rows


def conv_bn_kernel(w_ref, g_ref, b_ref, x_ref, o_ref,
                   stat_scr, sc_scr, *rest, n, c, inv_m, cached):
    """Two-phase fused 1x1-conv + training-mode BatchNorm.

    w_ref    : SMEM (C, C)          conv weight, w[co, ci]
    g_ref    : SMEM (C,)            BN gamma
    b_ref    : SMEM (C,)            BN beta
    x_ref    : VMEM (N*C, T)        input tile (rows = NCHW channel-rows)
    o_ref    : VMEM (N*C, T)        output tile (same layout)
    stat_scr : VMEM (2*C, T)        running per-lane sum / sum-of-squares
    sc_scr   : VMEM (2*C, 1)        folded per-channel scale / shift
    rest[0]  : VMEM (n_tiles,N*C,T) conv-output cache (only when cached=True)
    """
    y_cache = rest[0] if cached else None
    phase = pl.program_id(0)
    tid = pl.program_id(1)
    nc = n * c

    # Hoisted scalar reads: c*c SMEM weights read once per kernel invocation.
    w = [[w_ref[co, ci] for ci in range(c)] for co in range(c)]

    @pl.when(jnp.logical_and(phase == 0, tid == 0))
    def _init_stats():
        stat_scr[...] = jnp.zeros_like(stat_scr)

    @pl.when(phase == 0)
    def _accumulate():
        x = x_ref[...]                                    # (N*C, T)
        rows = _conv_rows(x, w, n, c)
        # Per-channel partial sums over the batch -> ONE dense (2C, T) update.
        sums, sqs = [], []
        for co in range(c):
            s = rows[0][co]
            q = rows[0][co] * rows[0][co]
            for ni in range(1, n):
                y = rows[ni][co]
                s = s + y
                q = q + y * y
            sums.append(s)
            sqs.append(q)
        stat_scr[...] = stat_scr[...] + jnp.concatenate(sums + sqs, axis=0)
        if cached:
            # Stash the conv output so phase 1 neither re-reads x from HBM
            # nor recomputes the conv.
            y_cache[tid] = jnp.concatenate(
                [rows[ni][co] for ni in range(n) for co in range(c)], axis=0)

    @pl.when(jnp.logical_and(phase == 1, tid == 0))
    def _fold_stats():
        # One-time fold of the global sums into per-channel scale/shift
        # (removes all cross-lane reductions from the per-tile phase-1 body).
        for co in range(c):
            s = stat_scr[pl.ds(co, 1), :]
            q = stat_scr[pl.ds(c + co, 1), :]
            mean = jnp.sum(s, axis=1, keepdims=True) * inv_m           # (1, 1)
            var = jnp.sum(q, axis=1, keepdims=True) * inv_m - mean * mean
            var = jnp.maximum(var, 0.0)    # guard E[y^2]-mean^2 cancellation
            scale = jax.lax.rsqrt(var + EPS) * g_ref[co]               # (1, 1)
            shift = b_ref[co] - mean * scale                           # (1, 1)
            sc_scr[pl.ds(co, 1), :] = scale
            sc_scr[pl.ds(c + co, 1), :] = shift

    @pl.when(phase == 1)
    def _normalize():
        scales = [sc_scr[pl.ds(co, 1), :] for co in range(c)]          # (1, 1)
        shifts = [sc_scr[pl.ds(c + co, 1), :] for co in range(c)]
        scale_col = jnp.concatenate([scales[r % c] for r in range(nc)], axis=0)
        shift_col = jnp.concatenate([shifts[r % c] for r in range(nc)], axis=0)
        if cached:
            y = y_cache[tid]                                           # (N*C, T)
        else:
            rows = _conv_rows(x_ref[...], w, n, c)
            y = jnp.concatenate(
                [rows[ni][co] for ni in range(n) for co in range(c)], axis=0)
        # Single dense (N*C, T) store instead of N*C masked single-row stores.
        o_ref[...] = y * scale_col + shift_col


def _round_up(a, b):
    return (a + b - 1) // b * b


def model_forward(x_nchw, conv_w, conv_b, bn_gamma, bn_beta, *,
                  max_tile_lanes=32768, force_no_cache=False):
    """x_nchw: (N, C, H, W); conv_w: (C, C, 1, 1); returns (N, C*H*W) f32."""
    del conv_b  # cancelled exactly by the training-mode BN mean subtraction
    n, c, h, w = x_nchw.shape
    hw = h * w
    nc = n * c

    x2d = x_nchw.reshape(nc, hw).astype(jnp.float32)     # pure reshape of NCHW
    w2 = conv_w.reshape(c, c).astype(jnp.float32)        # w[co, ci]
    g = bn_gamma.reshape(c).astype(jnp.float32)
    beta = bn_beta.reshape(c).astype(jnp.float32)

    # ---- generation-aware VMEM budget -------------------------------------
    try:
        vmem_cap = int(pltpu.get_tpu_info().vmem_capacity_bytes)
    except Exception:
        vmem_cap = 64 * 1024 * 1024       # conservative (v7x-sized) fallback
    budget = int(vmem_cap * 0.6)

    rows8 = _round_up(nc, 8)
    srows8 = _round_up(2 * c, 8)

    def _pipe_bytes(t):
        # double-buffered in/out blocks + stats scratch + elementwise temps
        return (4 * rows8 + srows8 + 2 * (rows8 + srows8)) * t * 4

    # ---- lane-dense tile selection -----------------------------------------
    max_tile_lanes = max(128, (max_tile_lanes // 128) * 128)
    hw128 = _round_up(hw, 128)
    tile = 128
    while (tile * 2 <= min(max_tile_lanes, hw128)
           and _pipe_bytes(tile * 2) <= budget // 2):
        tile *= 2
    if hw128 <= max_tile_lanes and _pipe_bytes(hw128) <= budget // 2:
        tile = hw128                      # single full-width lane-dense block
    hw_pad = _round_up(hw, tile)
    n_tiles = hw_pad // tile

    # ---- cache the conv output in VMEM when it fits (kills the 2nd HBM read)
    cache_bytes = n_tiles * rows8 * tile * 4
    cached = ((not force_no_cache) and n_tiles > 1
              and _pipe_bytes(tile) + cache_bytes <= budget)

    vmem_limit = int(min(vmem_cap,
                         max(32 * 1024 * 1024,
                             _pipe_bytes(tile)
                             + (cache_bytes if cached else 0)
                             + 8 * 1024 * 1024)))

    if hw_pad != hw:
        # Zero pixels contribute nothing to the bias-free conv sums, and the
        # true element count n*hw is used for mean/variance, so this is exact.
        x2d = jnp.pad(x2d, ((0, 0), (0, hw_pad - hw)))

    kernel = functools.partial(conv_bn_kernel, n=n, c=c,
                               inv_m=1.0 / float(n * hw), cached=cached)

    if cached:
        # Phase 1 reads the VMEM cache; park the input index map on the last
        # block fetched in phase 0 -> no HBM re-read is issued at all.
        x_map = lambda p, t: (0, t * (1 - p) + (n_tiles - 1) * p)
    else:
        x_map = lambda p, t: (0, t)

    scratch = [pltpu.VMEM((2 * c, tile), jnp.float32),   # running sum / sumsq
               pltpu.VMEM((2 * c, 1), jnp.float32)]      # folded scale / shift
    if cached:
        scratch.append(pltpu.VMEM((n_tiles, nc, tile), jnp.float32))

    out2d = pl.pallas_call(
        kernel,
        out_shape=jax.ShapeDtypeStruct((nc, hw_pad), jnp.float32),
        grid=(2, n_tiles),                                # (phase, lane tile)
        in_specs=[
            pl.BlockSpec(memory_space=pltpu.MemorySpace.SMEM),   # conv weight
            pl.BlockSpec(memory_space=pltpu.MemorySpace.SMEM),   # gamma
            pl.BlockSpec(memory_space=pltpu.MemorySpace.SMEM),   # beta
            pl.BlockSpec((nc, tile), x_map),                     # input tile
        ],
        # Park on block 0 during the stats phase so nothing is written back
        # then; phase 1 writes each output tile exactly once.
        out_specs=pl.BlockSpec((nc, tile), lambda p, t: (0, t * p)),
        scratch_shapes=scratch,
        compiler_params=pltpu.CompilerParams(
            # stat_scr / sc_scr are cross-iteration accumulators, so both grid
            # axes must stay sequential.  (A v7x megacore split into separate
            # stats / normalize calls would allow "parallel" tiles but forfeits
            # the VMEM conv cache.)
            dimension_semantics=("arbitrary", "arbitrary"),
            vmem_limit_bytes=vmem_limit),
    )(w2, g, beta, x2d)

    if hw_pad != hw:
        out2d = out2d[:, :hw]
    # (N*C, H*W) row-major is exactly flatten(NCHW, 1, -1) memory order.
    return out2d.reshape(n, c * hw)


def reference_forward(x_nchw, conv_w, conv_b, bn_gamma, bn_beta):
    """Pure-JAX reference (includes the conv bias, which BN cancels)."""
    nb, c, h, w = x_nchw.shape
    w2 = conv_w.reshape(c, c)
    y = jnp.einsum("nihw,oi->nohw", x_nchw, w2) + conv_b.reshape(1, c, 1, 1)
    mean = jnp.mean(y, axis=(0, 2, 3), keepdims=True)
    var = jnp.mean((y - mean) ** 2, axis=(0, 2, 3), keepdims=True)
    yhat = (y - mean) * jax.lax.rsqrt(var + EPS)
    yhat = yhat * bn_gamma.reshape(1, c, 1, 1) + bn_beta.reshape(1, c, 1, 1)
    return yhat.reshape(nb, c * h * w)


if __name__ == "__main__":
    key = jax.random.PRNGKey(0)
    k_x, k_w, k_b, k_x2, k_g, k_be = jax.random.split(key, 6)

    N, C, H, W = 2, 3, 16, 16          # channels fixed at 3 by the module
    x = jax.random.normal(k_x, (N, C, H, W), dtype=jnp.float32)
    bound = 1.0 / (float(C) ** 0.5)
    conv_w = jax.random.uniform(k_w, (C, C, 1, 1), jnp.float32, -bound, bound)
    conv_b = jax.random.uniform(k_b, (C,), jnp.float32, -bound, bound)
    bn_gamma = jnp.ones((C,), jnp.float32)      # BatchNorm2d default affine
    bn_beta = jnp.zeros((C,), jnp.float32)

    ref = reference_forward(x, conv_w, conv_b, bn_gamma, bn_beta)

    # 1) default path: single large lane-dense block (input stays resident,
    #    no HBM re-read).
    out = jax.block_until_ready(
        model_forward(x, conv_w, conv_b, bn_gamma, bn_beta))
    assert out.shape == (N, C * H * W)
    assert jnp.allclose(out, ref, atol=1e-4, rtol=1e-4), "mismatch (default)"

    # 2) forced multi-tile path with the VMEM conv-output cache.
    out_mt = jax.block_until_ready(
        model_forward(x, conv_w, conv_b, bn_gamma, bn_beta, max_tile_lanes=128))
    assert jnp.allclose(out_mt, ref, atol=1e-4, rtol=1e-4), "mismatch (cached)"

    # 3) forced multi-tile streaming path (cache disabled -> phase-1 re-conv).
    out_st = jax.block_until_ready(
        model_forward(x, conv_w, conv_b, bn_gamma, bn_beta,
                      max_tile_lanes=128, force_no_cache=True))
    assert jnp.allclose(out_st, ref, atol=1e-4, rtol=1e-4), "mismatch (stream)"

    # 4) the module's own shape (1, 3, 4, 4): exercises the lane-padding path
    #    and a non-trivial BN affine.
    x_odd = jax.random.normal(k_x2, (1, 3, 4, 4), dtype=jnp.float32)
    g_odd = 1.0 + 0.1 * jax.random.normal(k_g, (C,), dtype=jnp.float32)
    b_odd = 0.1 * jax.random.normal(k_be, (C,), dtype=jnp.float32)
    ref_odd = reference_forward(x_odd, conv_w, conv_b, g_odd, b_odd)
    out_odd = jax.block_until_ready(
        model_forward(x_odd, conv_w, conv_b, g_odd, b_odd))
    assert jnp.allclose(out_odd, ref_odd, atol=1e-4, rtol=1e-4), "mismatch (pad)"

    print("KERNEL_OK")
</pallas_src>

<mosaic_0001>
module attributes {stable_mosaic.version = 11 : i64} {
  func.func @conv_bn_kernel(%arg0: i32, %arg1: i32, %arg2: memref<3x3xf32, #tpu.memory_space<smem>>, %arg3: memref<3xf32, #tpu.memory_space<smem>>, %arg4: memref<3xf32, #tpu.memory_space<smem>>, %arg5: memref<6x256xf32, #tpu.memory_space<vmem>>, %arg6: memref<6x256xf32, #tpu.memory_space<vmem>>, %arg7: memref<6x256xf32, #tpu.memory_space<vmem>>, %arg8: memref<6x1xf32, #tpu.memory_space<vmem>>) attributes {dimension_semantics = [#tpu.dimension_semantics<arbitrary>, #tpu.dimension_semantics<arbitrary>], iteration_bounds = array<i64: 2, 1>, scalar_prefetch = 0 : i64, scratch_operands = 2 : i64, tpu.core_type = #tpu.core_type<tc>, window_params = [{transform_indices = @transform_0, window_bounds = array<i64: 3, 3>}, {transform_indices = @transform_1, window_bounds = array<i64: 3>}, {transform_indices = @transform_2, window_bounds = array<i64: 3>}, {transform_indices = @transform_3, window_bounds = array<i64: 6, 256>}, {transform_indices = @transform_4, window_bounds = array<i64: 6, 256>}]} {
    %c0 = arith.constant 0 : index
    %c0_0 = arith.constant 0 : index
    %0 = memref.load %arg2[%c0, %c0_0] : memref<3x3xf32, #tpu.memory_space<smem>>
    %c0_1 = arith.constant 0 : index
    %c1 = arith.constant 1 : index
    %1 = memref.load %arg2[%c0_1, %c1] : memref<3x3xf32, #tpu.memory_space<smem>>
    %c0_2 = arith.constant 0 : index
    %c2 = arith.constant 2 : index
    %2 = memref.load %arg2[%c0_2, %c2] : memref<3x3xf32, #tpu.memory_space<smem>>
    %c1_3 = arith.constant 1 : index
    %c0_4 = arith.constant 0 : index
    %3 = memref.load %arg2[%c1_3, %c0_4] : memref<3x3xf32, #tpu.memory_space<smem>>
    %c1_5 = arith.constant 1 : index
    %c1_6 = arith.constant 1 : index
    %4 = memref.load %arg2[%c1_5, %c1_6] : memref<3x3xf32, #tpu.memory_space<smem>>
    %c1_7 = arith.constant 1 : index
    %c2_8 = arith.constant 2 : index
    %5 = memref.load %arg2[%c1_7, %c2_8] : memref<3x3xf32, #tpu.memory_space<smem>>
    %c2_9 = arith.constant 2 : index
    %c0_10 = arith.constant 0 : index
    %6 = memref.load %arg2[%c2_9, %c0_10] : memref<3x3xf32, #tpu.memory_space<smem>>
    %c2_11 = arith.constant 2 : index
    %c1_12 = arith.constant 1 : index
    %7 = memref.load %arg2[%c2_11, %c1_12] : memref<3x3xf32, #tpu.memory_space<smem>>
    %c2_13 = arith.constant 2 : index
    %c2_14 = arith.constant 2 : index
    %8 = memref.load %arg2[%c2_13, %c2_14] : memref<3x3xf32, #tpu.memory_space<smem>>
    %c0_i32 = arith.constant 0 : i32
    %9 = arith.cmpi eq, %arg0, %c0_i32 : i32
    %c0_i32_15 = arith.constant 0 : i32
    %10 = arith.cmpi eq, %arg1, %c0_i32_15 : i32
    %11 = arith.andi %9, %10 : i1
    %12 = arith.extui %11 : i1 to i32
    %c0_i32_16 = arith.constant 0 : i32
    %13 = arith.cmpi ne, %12, %c0_i32_16 : i32
    scf.if %13 {
      %cst = arith.constant 0.000000e+00 : f32
      %25 = vector.broadcast %cst : f32 to vector<6x256xf32>
      %c0_23 = arith.constant 0 : index
      %c0_24 = arith.constant 0 : index
      %26 = vector.load %arg7[%c0_23, %c0_24] : memref<6x256xf32, #tpu.memory_space<vmem>>, vector<6x256xf32>
      tpu.vector_store %arg7[%c0_23, %c0_24], %25 {strides = array<i32>} : memref<6x256xf32, #tpu.memory_space<vmem>>, vector<6x256xf32>,
    } else {
    }
    %c0_i32_17 = arith.constant 0 : i32
    %14 = arith.cmpi eq, %arg0, %c0_i32_17 : i32
    %15 = arith.extui %14 : i1 to i32
    %c0_i32_18 = arith.constant 0 : i32
    %16 = arith.cmpi ne, %15, %c0_i32_18 : i32
    scf.if %16 {
      %c0_23 = arith.constant 0 : index
      %c0_24 = arith.constant 0 : index
      %25 = vector.load %arg5[%c0_23, %c0_24] : memref<6x256xf32, #tpu.memory_space<vmem>>, vector<6x256xf32>
      %26 = vector.extract_strided_slice %25 {offsets = [0, 0], sizes = [1, 256], strides = [1, 1]} : vector<6x256xf32> to vector<1x256xf32>
      %27 = vector.broadcast %0 : f32 to vector<1x256xf32>
      %28 = arith.mulf %27, %26 : vector<1x256xf32>
      %29 = vector.extract_strided_slice %25 {offsets = [1, 0], sizes = [1, 256], strides = [1, 1]} : vector<6x256xf32> to vector<1x256xf32>
      %30 = vector.broadcast %1 : f32 to vector<1x256xf32>
      %31 = arith.mulf %30, %29 : vector<1x256xf32>
      %32 = arith.addf %28, %31 : vector<1x256xf32>
      %33 = vector.extract_strided_slice %25 {offsets = [2, 0], sizes = [1, 256], strides = [1, 1]} : vector<6x256xf32> to vector<1x256xf32>
      %34 = vector.broadcast %2 : f32 to vector<1x256xf32>
      %35 = arith.mulf %34, %33 : vector<1x256xf32>
      %36 = arith.addf %32, %35 : vector<1x256xf32>
      %37 = vector.extract_strided_slice %25 {offsets = [0, 0], sizes = [1, 256], strides = [1, 1]} : vector<6x256xf32> to vector<1x256xf32>
      %38 = vector.broadcast %3 : f32 to vector<1x256xf32>
      %39 = arith.mulf %38, %37 : vector<1x256xf32>
      %40 = vector.extract_strided_slice %25 {offsets = [1, 0], sizes = [1, 256], strides = [1, 1]} : vector<6x256xf32> to vector<1x256xf32>
      %41 = vector.broadcast %4 : f32 to vector<1x256xf32>
      %42 = arith.mulf %41, %40 : vector<1x256xf32>
      %43 = arith.addf %39, %42 : vector<1x256xf32>
      %44 = vector.extract_strided_slice %25 {offsets = [2, 0], sizes = [1, 256], strides = [1, 1]} : vector<6x256xf32> to vector<1x256xf32>
      %45 = vector.broadcast %5 : f32 to vector<1x256xf32>
      %46 = arith.mulf %45, %44 : vector<1x256xf32>
      %47 = arith.addf %43, %46 : vector<1x256xf32>
      %48 = vector.extract_strided_slice %25 {offsets = [0, 0], sizes = [1, 256], strides = [1, 1]} : vector<6x256xf32> to vector<1x256xf32>
      %49 = vector.broadcast %6 : f32 to vector<1x256xf32>
      %50 = arith.mulf %49, %48 : vector<1x256xf32>
      %51 = vector.extract_strided_slice %25 {offsets = [1, 0], sizes = [1, 256], strides = [1, 1]} : vector<6x256xf32> to vector<1x256xf32>
      %52 = vector.broadcast %7 : f32 to vector<1x256xf32>
      %53 = arith.mulf %52, %51 : vector<1x256xf32>
      %54 = arith.addf %50, %53 : vector<1x256xf32>
      %55 = vector.extract_strided_slice %25 {offsets = [2, 0], sizes = [1, 256], strides = [1, 1]} : vector<6x256xf32> to vector<1x256xf32>
      %56 = vector.broadcast %8 : f32 to vector<1x256xf32>
      %57 = arith.mulf %56, %55 : vector<1x256xf32>
      %58 = arith.addf %54, %57 : vector<1x256xf32>
      %59 = vector.extract_strided_slice %25 {offsets = [3, 0], sizes = [1, 256], strides = [1, 1]} : vector<6x256xf32> to vector<1x256xf32>
      %60 = vector.broadcast %0 : f32 to vector<1x256xf32>
      %61 = arith.mulf %60, %59 : vector<1x256xf32>
      %62 = vector.extract_strided_slice %25 {offsets = [4, 0], sizes = [1, 256], strides = [1, 1]} : vector<6x256xf32> to vector<1x256xf32>
      %63 = vector.broadcast %1 : f32 to vector<1x256xf32>
      %64 = arith.mulf %63, %62 : vector<1x256xf32>
      %65 = arith.addf %61, %64 : vector<1x256xf32>
      %66 = vector.extract_strided_slice %25 {offsets = [5, 0], sizes = [1, 256], strides = [1, 1]} : vector<6x256xf32> to vector<1x256xf32>
      %67 = vector.broadcast %2 : f32 to vector<1x256xf32>
      %68 = arith.mulf %67, %66 : vector<1x256xf32>
      %69 = arith.addf %65, %68 : vector<1x256xf32>
      %70 = vector.extract_strided_slice %25 {offsets = [3, 0], sizes = [1, 256], strides = [1, 1]} : vector<6x256xf32> to vector<1x256xf32>
      %71 = vector.broadcast %3 : f32 to vector<1x256xf32>
      %72 = arith.mulf %71, %70 : vector<1x256xf32>
      %73 = vector.extract_strided_slice %25 {offsets = [4, 0], sizes = [1, 256], strides = [1, 1]} : vector<6x256xf32> to vector<1x256xf32>
      %74 = vector.broadcast %4 : f32 to vector<1x256xf32>
      %75 = arith.mulf %74, %73 : vector<1x256xf32>
      %76 = arith.addf %72, %75 : vector<1x256xf32>
      %77 = vector.extract_strided_slice %25 {offsets = [5, 0], sizes = [1, 256], strides = [1, 1]} : vector<6x256xf32> to vector<1x256xf32>
      %78 = vector.broadcast %5 : f32 to vector<1x256xf32>
      %79 = arith.mulf %78, %77 : vector<1x256xf32>
      %80 = arith.addf %76, %79 : vector<1x256xf32>
      %81 = vector.extract_strided_slice %25 {offsets = [3, 0], sizes = [1, 256], strides = [1, 1]} : vector<6x256xf32> to vector<1x256xf32>
      %82 = vector.broadcast %6 : f32 to vector<1x256xf32>
      %83 = arith.mulf %82, %81 : vector<1x256xf32>
      %84 = vector.extract_strided_slice %25 {offsets = [4, 0], sizes = [1, 256], strides = [1, 1]} : vector<6x256xf32> to vector<1x256xf32>
      %85 = vector.broadcast %7 : f32 to vector<1x256xf32>
      %86 = arith.mulf %85, %84 : vector<1x256xf32>
      %87 = arith.addf %83, %86 : vector<1x256xf32>
      %88 = vector.extract_strided_slice %25 {offsets = [5, 0], sizes = [1, 256], strides = [1, 1]} : vector<6x256xf32> to vector<1x256xf32>
      %89 = vector.broadcast %8 : f32 to vector<1x256xf32>
      %90 = arith.mulf %89, %88 : vector<1x256xf32>
      %91 = arith.addf %87, %90 : vector<1x256xf32>
      %92 = arith.mulf %36, %36 : vector<1x256xf32>
      %93 = arith.addf %36, %69 : vector<1x256xf32>
      %94 = arith.mulf %69, %69 : vector<1x256xf32>
      %95 = arith.addf %92, %94 : vector<1x256xf32>
      %96 = arith.mulf %47, %47 : vector<1x256xf32>
      %97 = arith.addf %47, %80 : vector<1x256xf32>
      %98 = arith.mulf %80, %80 : vector<1x256xf32>
      %99 = arith.addf %96, %98 : vector<1x256xf32>
      %100 = arith.mulf %58, %58 : vector<1x256xf32>
      %101 = arith.addf %58, %91 : vector<1x256xf32>
      %102 = arith.mulf %91, %91 : vector<1x256xf32>
      %103 = arith.addf %100, %102 : vector<1x256xf32>
      %c0_25 = arith.constant 0 : index
      %c0_26 = arith.constant 0 : index
      %104 = vector.load %arg7[%c0_25, %c0_26] : memref<6x256xf32, #tpu.memory_space<vmem>>, vector<6x256xf32>
      %105 = tpu.concatenate %93, %97, %101, %95, %99, %103 in 0 : vector<1x256xf32>, vector<1x256xf32>, vector<1x256xf32>, vector<1x256xf32>, vector<1x256xf32>, vector<1x256xf32> -> vector<6x256xf32>
      %106 = arith.addf %104, %105 : vector<6x256xf32>
      %c0_27 = arith.constant 0 : index
      %c0_28 = arith.constant 0 : index
      %107 = vector.load %arg7[%c0_27, %c0_28] : memref<6x256xf32, #tpu.memory_space<vmem>>, vector<6x256xf32>
      tpu.vector_store %arg7[%c0_27, %c0_28], %106 {strides = array<i32>} : memref<6x256xf32, #tpu.memory_space<vmem>>, vector<6x256xf32>,
    } else {
    }
    %c1_i32 = arith.constant 1 : i32
    %17 = arith.cmpi eq, %arg0, %c1_i32 : i32
    %c0_i32_19 = arith.constant 0 : i32
    %18 = arith.cmpi eq, %arg1, %c0_i32_19 : i32
    %19 = arith.andi %17, %18 : i1
    %20 = arith.extui %19 : i1 to i32
    %c0_i32_20 = arith.constant 0 : i32
    %21 = arith.cmpi ne, %20, %c0_i32_20 : i32
    scf.if %21 {
      %c0_23 = arith.constant 0 : index
      %c0_24 = arith.constant 0 : index
      %25 = vector.load %arg7[%c0_23, %c0_24] : memref<6x256xf32, #tpu.memory_space<vmem>>, vector<1x256xf32>
      %c3 = arith.constant 3 : index
      %c0_25 = arith.constant 0 : index
      %26 = vector.load %arg7[%c3, %c0_25] : memref<6x256xf32, #tpu.memory_space<vmem>>, vector<1x256xf32>
      %cst = arith.constant dense<0.000000e+00> : vector<1xf32>
      %27 = vector.multi_reduction <add>, %25, %cst [1] : vector<1x256xf32> to vector<1xf32>
      %28 = vector.shape_cast %27 : vector<1xf32> to vector<1x1xf32>
      %cst_26 = arith.constant 0.001953125 : f32
      %29 = vector.broadcast %cst_26 : f32 to vector<1x1xf32>
      %30 = arith.mulf %28, %29 : vector<1x1xf32>
      %cst_27 = arith.constant dense<0.000000e+00> : vector<1xf32>
      %31 = vector.multi_reduction <add>, %26, %cst_27 [1] : vector<1x256xf32> to vector<1xf32>
      %32 = vector.shape_cast %31 : vector<1xf32> to vector<1x1xf32>
      %cst_28 = arith.constant 0.001953125 : f32
      %33 = vector.broadcast %cst_28 : f32 to vector<1x1xf32>
      %34 = arith.mulf %32, %33 : vector<1x1xf32>
      %35 = arith.mulf %30, %30 : vector<1x1xf32>
      %36 = arith.subf %34, %35 : vector<1x1xf32>
      %cst_29 = arith.constant 0.000000e+00 : f32
      %37 = vector.broadcast %cst_29 : f32 to vector<1x1xf32>
      %38 = arith.maximumf %36, %37 : vector<1x1xf32>
      %cst_30 = arith.constant 9.99999974E-6 : f32
      %39 = vector.broadcast %cst_30 : f32 to vector<1x1xf32>
      %40 = arith.addf %38, %39 : vector<1x1xf32>
      %41 = math.rsqrt %40 : vector<1x1xf32>
      %c0_31 = arith.constant 0 : index
      %42 = memref.load %arg3[%c0_31] : memref<3xf32, #tpu.memory_space<smem>>
      %43 = vector.broadcast %42 : f32 to vector<1x1xf32>
      %44 = arith.mulf %41, %43 : vector<1x1xf32>
      %c0_32 = arith.constant 0 : index
      %45 = memref.load %arg4[%c0_32] : memref<3xf32, #tpu.memory_space<smem>>
      %46 = arith.mulf %30, %44 : vector<1x1xf32>
      %47 = vector.broadcast %45 : f32 to vector<1x1xf32>
      %48 = arith.subf %47, %46 : vector<1x1xf32>
      %c0_33 = arith.constant 0 : index
      %c0_34 = arith.constant 0 : index
      %49 = vector.load %arg8[%c0_33, %c0_34] : memref<6x1xf32, #tpu.memory_space<vmem>>, vector<1x1xf32>
      tpu.vector_store %arg8[%c0_33, %c0_34], %44 {strides = array<i32>} : memref<6x1xf32, #tpu.memory_space<vmem>>, vector<1x1xf32>,
      %c3_35 = arith.constant 3 : index
      %c0_36 = arith.constant 0 : index
      %50 = vector.load %arg8[%c3_35, %c0_36] : memref<6x1xf32, #tpu.memory_space<vmem>>, vector<1x1xf32>
      tpu.vector_store %arg8[%c3_35, %c0_36], %48 {strides = array<i32>} : memref<6x1xf32, #tpu.memory_space<vmem>>, vector<1x1xf32>,
      %c1_37 = arith.constant 1 : index
      %c0_38 = arith.constant 0 : index
      %51 = vector.load %arg7[%c1_37, %c0_38] : memref<6x256xf32, #tpu.memory_space<vmem>>, vector<1x256xf32>
      %c4 = arith.constant 4 : index
      %c0_39 = arith.constant 0 : index
      %52 = vector.load %arg7[%c4, %c0_39] : memref<6x256xf32, #tpu.memory_space<vmem>>, vector<1x256xf32>
      %cst_40 = arith.constant dense<0.000000e+00> : vector<1xf32>
      %53 = vector.multi_reduction <add>, %51, %cst_40 [1] : vector<1x256xf32> to vector<1xf32>
      %54 = vector.shape_cast %53 : vector<1xf32> to vector<1x1xf32>
      %cst_41 = arith.constant 0.001953125 : f32
      %55 = vector.broadcast %cst_41 : f32 to vector<1x1xf32>
      %56 = arith.mulf %54, %55 : vector<1x1xf32>
      %cst_42 = arith.constant dense<0.000000e+00> : vector<1xf32>
      %57 = vector.multi_reduction <add>, %52, %cst_42 [1] : vector<1x256xf32> to vector<1xf32>
      %58 = vector.shape_cast %57 : vector<1xf32> to vector<1x1xf32>
      %cst_43 = arith.constant 0.001953125 : f32
      %59 = vector.broadcast %cst_43 : f32 to vector<1x1xf32>
      %60 = arith.mulf %58, %59 : vector<1x1xf32>
      %61 = arith.mulf %56, %56 : vector<1x1xf32>
      %62 = arith.subf %60, %61 : vector<1x1xf32>
      %cst_44 = arith.constant 0.000000e+00 : f32
      %63 = vector.broadcast %cst_44 : f32 to vector<1x1xf32>
      %64 = arith.maximumf %62, %63 : vector<1x1xf32>
      %cst_45 = arith.constant 9.99999974E-6 : f32
      %65 = vector.broadcast %cst_45 : f32 to vector<1x1xf32>
      %66 = arith.addf %64, %65 : vector<1x1xf32>
      %67 = math.rsqrt %66 : vector<1x1xf32>
      %c1_46 = arith.constant 1 : index
      %68 = memref.load %arg3[%c1_46] : memref<3xf32, #tpu.memory_space<smem>>
      %69 = vector.broadcast %68 : f32 to vector<1x1xf32>
      %70 = arith.mulf %67, %69 : vector<1x1xf32>
      %c1_47 = arith.constant 1 : index
      %71 = memref.load %arg4[%c1_47] : memref<3xf32, #tpu.memory_space<smem>>
      %72 = arith.mulf %56, %70 : vector<1x1xf32>
      %73 = vector.broadcast %71 : f32 to vector<1x1xf32>
      %74 = arith.subf %73, %72 : vector<1x1xf32>
      %c1_48 = arith.constant 1 : index
      %c0_49 = arith.constant 0 : index
      %75 = vector.load %arg8[%c1_48, %c0_49] : memref<6x1xf32, #tpu.memory_space<vmem>>, vector<1x1xf32>
      tpu.vector_store %arg8[%c1_48, %c0_49], %70 {strides = array<i32>} : memref<6x1xf32, #tpu.memory_space<vmem>>, vector<1x1xf32>,
      %c4_50 = arith.constant 4 : index
      %c0_51 = arith.constant 0 : index
      %76 = vector.load %arg8[%c4_50, %c0_51] : memref<6x1xf32, #tpu.memory_space<vmem>>, vector<1x1xf32>
      tpu.vector_store %arg8[%c4_50, %c0_51], %74 {strides = array<i32>} : memref<6x1xf32, #tpu.memory_space<vmem>>, vector<1x1xf32>,
      %c2_52 = arith.constant 2 : index
      %c0_53 = arith.constant 0 : index
      %77 = vector.load %arg7[%c2_52, %c0_53] : memref<6x256xf32, #tpu.memory_space<vmem>>, vector<1x256xf32>
      %c5 = arith.constant 5 : index
      %c0_54 = arith.constant 0 : index
      %78 = vector.load %arg7[%c5, %c0_54] : memref<6x256xf32, #tpu.memory_space<vmem>>, vector<1x256xf32>
      %cst_55 = arith.constant dense<0.000000e+00> : vector<1xf32>
      %79 = vector.multi_reduction <add>, %77, %cst_55 [1] : vector<1x256xf32> to vector<1xf32>
      %80 = vector.shape_cast %79 : vector<1xf32> to vector<1x1xf32>
      %cst_56 = arith.constant 0.001953125 : f32
      %81 = vector.broadcast %cst_56 : f32 to vector<1x1xf32>
      %82 = arith.mulf %80, %81 : vector<1x1xf32>
      %cst_57 = arith.constant dense<0.000000e+00> : vector<1xf32>
      %83 = vector.multi_reduction <add>, %78, %cst_57 [1] : vector<1x256xf32> to vector<1xf32>
      %84 = vector.shape_cast %83 : vector<1xf32> to vector<1x1xf32>
      %cst_58 = arith.constant 0.001953125 : f32
      %85 = vector.broadcast %cst_58 : f32 to vector<1x1xf32>
      %86 = arith.mulf %84, %85 : vector<1x1xf32>
      %87 = arith.mulf %82, %82 : vector<1x1xf32>
      %88 = arith.subf %86, %87 : vector<1x1xf32>
      %cst_59 = arith.constant 0.000000e+00 : f32
      %89 = vector.broadcast %cst_59 : f32 to vector<1x1xf32>
      %90 = arith.maximumf %88, %89 : vector<1x1xf32>
      %cst_60 = arith.constant 9.99999974E-6 : f32
      %91 = vector.broadcast %cst_60 : f32 to vector<1x1xf32>
      %92 = arith.addf %90, %91 : vector<1x1xf32>
      %93 = math.rsqrt %92 : vector<1x1xf32>
      %c2_61 = arith.constant 2 : index
      %94 = memref.load %arg3[%c2_61] : memref<3xf32, #tpu.memory_space<smem>>
      %95 = vector.broadcast %94 : f32 to vector<1x1xf32>
      %96 = arith.mulf %93, %95 : vector<1x1xf32>
      %c2_62 = arith.constant 2 : index
      %97 = memref.load %arg4[%c2_62] : memref<3xf32, #tpu.memory_space<smem>>
      %98 = arith.mulf %82, %96 : vector<1x1xf32>
      %99 = vector.broadcast %97 : f32 to vector<1x1xf32>
      %100 = arith.subf %99, %98 : vector<1x1xf32>
      %c2_63 = arith.constant 2 : index
      %c0_64 = arith.constant 0 : index
      %101 = vector.load %arg8[%c2_63, %c0_64] : memref<6x1xf32, #tpu.memory_space<vmem>>, vector<1x1xf32>
      tpu.vector_store %arg8[%c2_63, %c0_64], %96 {strides = array<i32>} : memref<6x1xf32, #tpu.memory_space<vmem>>, vector<1x1xf32>,
      %c5_65 = arith.constant 5 : index
      %c0_66 = arith.constant 0 : index
      %102 = vector.load %arg8[%c5_65, %c0_66] : memref<6x1xf32, #tpu.memory_space<vmem>>, vector<1x1xf32>
      tpu.vector_store %arg8[%c5_65, %c0_66], %100 {strides = array<i32>} : memref<6x1xf32, #tpu.memory_space<vmem>>, vector<1x1xf32>,
    } else {
    }
    %c1_i32_21 = arith.constant 1 : i32
    %22 = arith.cmpi eq, %arg0, %c1_i32_21 : i32
    %23 = arith.extui %22 : i1 to i32
    %c0_i32_22 = arith.constant 0 : i32
    %24 = arith.cmpi ne, %23, %c0_i32_22 : i32
    scf.if %24 {
      %c0_23 = arith.constant 0 : index
      %c0_24 = arith.constant 0 : index
      %25 = vector.load %arg8[%c0_23, %c0_24] : memref<6x1xf32, #tpu.memory_space<vmem>>, vector<1x1xf32>
      %c1_25 = arith.constant 1 : index
      %c0_26 = arith.constant 0 : index
      %26 = vector.load %arg8[%c1_25, %c0_26] : memref<6x1xf32, #tpu.memory_space<vmem>>, vector<1x1xf32>
      %c2_27 = arith.constant 2 : index
      %c0_28 = arith.constant 0 : index
      %27 = vector.load %arg8[%c2_27, %c0_28] : memref<6x1xf32, #tpu.memory_space<vmem>>, vector<1x1xf32>
      %c3 = arith.constant 3 : index
      %c0_29 = arith.constant 0 : index
      %28 = vector.load %arg8[%c3, %c0_29] : memref<6x1xf32, #tpu.memory_space<vmem>>, vector<1x1xf32>
      %c4 = arith.constant 4 : index
      %c0_30 = arith.constant 0 : index
      %29 = vector.load %arg8[%c4, %c0_30] : memref<6x1xf32, #tpu.memory_space<vmem>>, vector<1x1xf32>
      %c5 = arith.constant 5 : index
      %c0_31 = arith.constant 0 : index
      %30 = vector.load %arg8[%c5, %c0_31] : memref<6x1xf32, #tpu.memory_space<vmem>>, vector<1x1xf32>
      %31 = tpu.concatenate %25, %26, %27, %25, %26, %27 in 0 : vector<1x1xf32>, vector<1x1xf32>, vector<1x1xf32>, vector<1x1xf32>, vector<1x1xf32>, vector<1x1xf32> -> vector<6x1xf32>
      %32 = tpu.concatenate %28, %29, %30, %28, %29, %30 in 0 : vector<1x1xf32>, vector<1x1xf32>, vector<1x1xf32>, vector<1x1xf32>, vector<1x1xf32>, vector<1x1xf32> -> vector<6x1xf32>
      %c0_32 = arith.constant 0 : index
      %c0_33 = arith.constant 0 : index
      %33 = vector.load %arg5[%c0_32, %c0_33] : memref<6x256xf32, #tpu.memory_space<vmem>>, vector<6x256xf32>
      %34 = vector.extract_strided_slice %33 {offsets = [0, 0], sizes = [1, 256], strides = [1, 1]} : vector<6x256xf32> to vector<1x256xf32>
      %35 = vector.broadcast %0 : f32 to vector<1x256xf32>
      %36 = arith.mulf %35, %34 : vector<1x256xf32>
      %37 = vector.extract_strided_slice %33 {offsets = [1, 0], sizes = [1, 256], strides = [1, 1]} : vector<6x256xf32> to vector<1x256xf32>
      %38 = vector.broadcast %1 : f32 to vector<1x256xf32>
      %39 = arith.mulf %38, %37 : vector<1x256xf32>
      %40 = arith.addf %36, %39 : vector<1x256xf32>
      %41 = vector.extract_strided_slice %33 {offsets = [2, 0], sizes = [1, 256], strides = [1, 1]} : vector<6x256xf32> to vector<1x256xf32>
      %42 = vector.broadcast %2 : f32 to vector<1x256xf32>
      %43 = arith.mulf %42, %41 : vector<1x256xf32>
      %44 = arith.addf %40, %43 : vector<1x256xf32>
      %45 = vector.extract_strided_slice %33 {offsets = [0, 0], sizes = [1, 256], strides = [1, 1]} : vector<6x256xf32> to vector<1x256xf32>
      %46 = vector.broadcast %3 : f32 to vector<1x256xf32>
      %47 = arith.mulf %46, %45 : vector<1x256xf32>
      %48 = vector.extract_strided_slice %33 {offsets = [1, 0], sizes = [1, 256], strides = [1, 1]} : vector<6x256xf32> to vector<1x256xf32>
      %49 = vector.broadcast %4 : f32 to vector<1x256xf32>
      %50 = arith.mulf %49, %48 : vector<1x256xf32>
      %51 = arith.addf %47, %50 : vector<1x256xf32>
      %52 = vector.extract_strided_slice %33 {offsets = [2, 0], sizes = [1, 256], strides = [1, 1]} : vector<6x256xf32> to vector<1x256xf32>
      %53 = vector.broadcast %5 : f32 to vector<1x256xf32>
      %54 = arith.mulf %53, %52 : vector<1x256xf32>
      %55 = arith.addf %51, %54 : vector<1x256xf32>
      %56 = vector.extract_strided_slice %33 {offsets = [0, 0], sizes = [1, 256], strides = [1, 1]} : vector<6x256xf32> to vector<1x256xf32>
      %57 = vector.broadcast %6 : f32 to vector<1x256xf32>
      %58 = arith.mulf %57, %56 : vector<1x256xf32>
      %59 = vector.extract_strided_slice %33 {offsets = [1, 0], sizes = [1, 256], strides = [1, 1]} : vector<6x256xf32> to vector<1x256xf32>
      %60 = vector.broadcast %7 : f32 to vector<1x256xf32>
      %61 = arith.mulf %60, %59 : vector<1x256xf32>
      %62 = arith.addf %58, %61 : vector<1x256xf32>
      %63 = vector.extract_strided_slice %33 {offsets = [2, 0], sizes = [1, 256], strides = [1, 1]} : vector<6x256xf32> to vector<1x256xf32>
      %64 = vector.broadcast %8 : f32 to vector<1x256xf32>
      %65 = arith.mulf %64, %63 : vector<1x256xf32>
      %66 = arith.addf %62, %65 : vector<1x256xf32>
      %67 = vector.extract_strided_slice %33 {offsets = [3, 0], sizes = [1, 256], strides = [1, 1]} : vector<6x256xf32> to vector<1x256xf32>
      %68 = vector.broadcast %0 : f32 to vector<1x256xf32>
      %69 = arith.mulf %68, %67 : vector<1x256xf32>
      %70 = vector.extract_strided_slice %33 {offsets = [4, 0], sizes = [1, 256], strides = [1, 1]} : vector<6x256xf32> to vector<1x256xf32>
      %71 = vector.broadcast %1 : f32 to vector<1x256xf32>
      %72 = arith.mulf %71, %70 : vector<1x256xf32>
      %73 = arith.addf %69, %72 : vector<1x256xf32>
      %74 = vector.extract_strided_slice %33 {offsets = [5, 0], sizes = [1, 256], strides = [1, 1]} : vector<6x256xf32> to vector<1x256xf32>
      %75 = vector.broadcast %2 : f32 to vector<1x256xf32>
      %76 = arith.mulf %75, %74 : vector<1x256xf32>
      %77 = arith.addf %73, %76 : vector<1x256xf32>
      %78 = vector.extract_strided_slice %33 {offsets = [3, 0], sizes = [1, 256], strides = [1, 1]} : vector<6x256xf32> to vector<1x256xf32>
      %79 = vector.broadcast %3 : f32 to vector<1x256xf32>
      %80 = arith.mulf %79, %78 : vector<1x256xf32>
      %81 = vector.extract_strided_slice %33 {offsets = [4, 0], sizes = [1, 256], strides = [1, 1]} : vector<6x256xf32> to vector<1x256xf32>
      %82 = vector.broadcast %4 : f32 to vector<1x256xf32>
      %83 = arith.mulf %82, %81 : vector<1x256xf32>
      %84 = arith.addf %80, %83 : vector<1x256xf32>
      %85 = vector.extract_strided_slice %33 {offsets = [5, 0], sizes = [1, 256], strides = [1, 1]} : vector<6x256xf32> to vector<1x256xf32>
      %86 = vector.broadcast %5 : f32 to vector<1x256xf32>
      %87 = arith.mulf %86, %85 : vector<1x256xf32>
      %88 = arith.addf %84, %87 : vector<1x256xf32>
      %89 = vector.extract_strided_slice %33 {offsets = [3, 0], sizes = [1, 256], strides = [1, 1]} : vector<6x256xf32> to vector<1x256xf32>
      %90 = vector.broadcast %6 : f32 to vector<1x256xf32>
      %91 = arith.mulf %90, %89 : vector<1x256xf32>
      %92 = vector.extract_strided_slice %33 {offsets = [4, 0], sizes = [1, 256], strides = [1, 1]} : vector<6x256xf32> to vector<1x256xf32>
      %93 = vector.broadcast %7 : f32 to vector<1x256xf32>
      %94 = arith.mulf %93, %92 : vector<1x256xf32>
      %95 = arith.addf %91, %94 : vector<1x256xf32>
      %96 = vector.extract_strided_slice %33 {offsets = [5, 0], sizes = [1, 256], strides = [1, 1]} : vector<6x256xf32> to vector<1x256xf32>
      %97 = vector.broadcast %8 : f32 to vector<1x256xf32>
      %98 = arith.mulf %97, %96 : vector<1x256xf32>
      %99 = arith.addf %95, %98 : vector<1x256xf32>
      %100 = tpu.concatenate %44, %55, %66, %77, %88, %99 in 0 : vector<1x256xf32>, vector<1x256xf32>, vector<1x256xf32>, vector<1x256xf32>, vector<1x256xf32>, vector<1x256xf32> -> vector<6x256xf32>
      %101 = vector.broadcast %31 : vector<6x1xf32> to vector<6x256xf32>
      %102 = arith.mulf %100, %101 : vector<6x256xf32>
      %103 = vector.broadcast %32 : vector<6x1xf32> to vector<6x256xf32>
      %104 = arith.addf %102, %103 : vector<6x256xf32>
      %c0_34 = arith.constant 0 : index
      %c0_35 = arith.constant 0 : index
      %105 = vector.load %arg6[%c0_34, %c0_35] : memref<6x256xf32, #tpu.memory_space<vmem>>, vector<6x256xf32>
      tpu.vector_store %arg6[%c0_34, %c0_35], %104 {strides = array<i32>} : memref<6x256xf32, #tpu.memory_space<vmem>>, vector<6x256xf32>,
    } else {
    }
    return
  }
  func.func @transform_0(%arg0: i32, %arg1: i32) -> (i32, i32) {
    %c0_i32 = arith.constant 0 : i32
    %c0_i32_0 = arith.constant 0 : i32
    %c0_i32_1 = arith.constant 0 : i32
    return %c0_i32, %c0_i32_0 : i32, i32
  }
  func.func @transform_1(%arg0: i32, %arg1: i32) -> i32 {
    %c0_i32 = arith.constant 0 : i32
    %c0_i32_0 = arith.constant 0 : i32
    return %c0_i32 : i32
  }
  func.func @transform_2(%arg0: i32, %arg1: i32) -> i32 {
    %c0_i32 = arith.constant 0 : i32
    %c0_i32_0 = arith.constant 0 : i32
    return %c0_i32 : i32
  }
  func.func @transform_3(%arg0: i32, %arg1: i32) -> (i32, i32) {
    %c0_i32 = arith.constant 0 : i32
    %c0_i32_0 = arith.constant 0 : i32
    return %c0_i32, %arg1 : i32, i32
  }
  func.func @transform_4(%arg0: i32, %arg1: i32) -> (i32, i32) {
    %0 = arith.muli %arg1, %arg0 : i32
    %c0_i32 = arith.constant 0 : i32
    %c0_i32_0 = arith.constant 0 : i32
    return %c0_i32, %0 : i32, i32
  }
}

</mosaic_0001>

<llo_original>
// kernel: tpu_custom_call.1
$region0: #{tpu_custom_call.1}
  #allocation0 [shape = 'u32[]', space=smem, size = 0x4, offset = 0x4, fixed_abs, tag = 'smem constant byte address 0x4 - core index']
  #allocation1 [shape = 'u32[72,128]{1,0:T(1,128)}', space=vmem, size = 0x9000, scoped, tag = 'internal scratch']
  #allocation2 [shape = 'f32[6,256]{1,0:T(8,128)}', space=vmem, size = 0x2000, scoped, tag = 'scratch operand']
  #allocation3 [shape = 'f32[6,1]{1,0:T(8,128)}', space=vmem, size = 0x1000, scoped, tag = 'scratch operand']
  %s0 = inlined_call_operand.hbm [shape: f32[3,3], index: 0, kind: input, shape index: {}]
  %s1 = inlined_call_operand.hbm [shape: f32[3], index: 1, kind: input, shape index: {}]
  %s2 = inlined_call_operand.vmem [shape: f32[3], index: 2, kind: input, shape index: {}]
  %s3 = inlined_call_operand.hbm [shape: f32[6,256], index: 3, kind: input, shape index: {}]
  %s4 = inlined_call_operand.hbm [shape: f32[6,256], index: 4, kind: output, shape index: {}]
  %s5 = sld [smem:[#allocation0]]
  $region81: #{tpu_custom_call.1} parent=0
    _
  %s7 = ssub.s32 1, %s5
  %s8 = scalar_select 0, %s7, %s5
  $region1: #{tpu_custom_call.1} parent=0
    #allocation4 [shape = 'u8[2048]{0}', space=smem, size = 0x800, scoped, tag = 'input window, operand 0, single buffered']
    #allocation5 [shape = 's32[2]{0}', space=sflag, size = 0x8, scoped, tag = 'scoped memory for tpu_custom_call.1']
    #allocation6 [shape = 's32[2]{0}', space=sflag, size = 0x8, scoped, tag = 'scoped memory for tpu_custom_call.1']
    #allocation7 [shape = 's32[2]{0}', space=sflag, size = 0x8, scoped, tag = 'scoped memory for tpu_custom_call.1']
    #allocation8 [shape = 's32[2]{0}', space=sflag, size = 0x8, scoped, tag = 'scoped memory for tpu_custom_call.1']
    #allocation9 [shape = 'u8[512]{0}', space=smem, size = 0x200, scoped, tag = 'input window, operand 1, single buffered']
    #allocation10 [shape = 's32[1]{0}', space=sflag, size = 0x4, scoped, tag = 'scoped memory for tpu_custom_call.1']
    #allocation11 [shape = 'u8[512]{0}', space=smem, size = 0x200, scoped, tag = 'input window, operand 2, single buffered']
    #allocation12 [shape = 'u8[8192]{0}', space=vmem, size = 0x2000, scoped, tag = 'input window, operand 3, single buffered']
    #allocation13 [shape = 'u8[16384]{0}', space=vmem, size = 0x4000, scoped, tag = 'output window, operand 0']
    %9 = vsyncpa [#allocation7], 0
    %10 = vsyncpa [#allocation10], 0
    %11 = vsyncpa [#allocation8], 0
    %12 = vsyncpa [#allocation5], 0
    %13 = vsyncpa [#allocation6], 0
    %s14 = scalar_lea.sflag [#allocation6], 1
    %15 = vsyncpa %s14, 0
    loop: start=0, step=1, limit=4
    $region2: #{tpu_custom_call.1} parent=1 // loop_pre_header
      _
    $region3: #{tpu_custom_call.1} parent=1 // loop_header
      %s17 = sphi 0, %s21
      %p18 = scmp.ge.s32.totalorder %s17, 4
      %s24 = sphi 0, %s36
      %s25 = sphi 0, %s32
      %s26 = sphi 0, %s24
      %s27 = sphi 0, %s25
      %s28 = sphi 0, %s26
      %s29 = sphi 0, %s27
      %s37 = sphi 0, %s37
      %s39 = sphi 0, %s37
      %s40 = sphi 0, %s39
      %s54 = sphi 0, %s40
      %s58 = sphi 0, %s58
      %s60 = sphi 0, %s58
      %s61 = sphi 0, %s60
      %s75 = sphi 0, %s61
      %s79 = sphi 0, %s79
      %s81 = sphi 0, %s79
      %s82 = sphi 0, %s81
      %s96 = sphi 0, %s82
      %s102 = sphi 0, %s104
      %s105 = sphi 0, %s102
      %s106 = sphi 0, %s105
      %s122 = sphi 0, %s106
      %s130 = sphi 0, %s132
      %s133 = sphi 0, %s130
      %s134 = sphi 0, %s133
      %s150 = sphi 0, %s134
    $region4: #{tpu_custom_call.1} parent=1 // loop_header_branch
      %20 = sbr.rel (%p18) target = $region8
    $region5: #{tpu_custom_call.1} parent=1 // loop_body
      %s22 = ssub.s32 %s17, 1
      %s23 = ssub.s32 %s17, 2
      %s30 = sadd.s32 1, %s25
      %p31 = scmp.ge.s32.totalorder %s30, 1
      %s32 = scalar_select %p31, 0, %s30
      %s33 = sadd.s32 1, %s24
      %s34 = scalar_select %p31, %s33, %s24
      %p35 = scmp.ge.s32.totalorder %s34, 2
      %s36 = scalar_select %p35, 0, %s34
      %s38 = sadd.s32 %s37, 1
      %p41 = scmp.eq.s32.totalorder %s17, 1
      %p42 = scmp.ne.s32.totalorder %s37, %s39
      %p43 = scmp.eq.s32.totalorder %s17, 0
      %p44 = por %p42, %p43
      %p45 = scmp.ne.s32.totalorder %s37, %s39
      %p46 = scmp.eq.s32.totalorder %s22, 1
      %p47 = por %p45, %p46
      %p48 = scmp.ne.s32.totalorder %s39, %s40
      %p49 = scmp.eq.s32.totalorder %s22, 0
      %p50 = por %p48, %p49
      %p51 = scmp.ne.s32.totalorder %s39, %s40
      %p52 = scmp.eq.s32.totalorder %s23, 1
      %p53 = por %p51, %p52
      %p55 = scmp.ne.s32.totalorder %s40, %s54
      %p56 = scmp.eq.s32.totalorder %s23, 0
      %p57 = por %p55, %p56
      %s59 = sadd.s32 %s58, 1
      %p62 = scmp.eq.s32.totalorder %s17, 1
      %p63 = scmp.ne.s32.totalorder %s58, %s60
      %p64 = scmp.eq.s32.totalorder %s17, 0
      %p65 = por %p63, %p64
      %p66 = scmp.ne.s32.totalorder %s58, %s60
      %p67 = scmp.eq.s32.totalorder %s22, 1
      %p68 = por %p66, %p67
      %p69 = scmp.ne.s32.totalorder %s60, %s61
      %p70 = scmp.eq.s32.totalorder %s22, 0
      %p71 = por %p69, %p70
      %p72 = scmp.ne.s32.totalorder %s60, %s61
      %p73 = scmp.eq.s32.totalorder %s23, 1
      %p74 = por %p72, %p73
      %p76 = scmp.ne.s32.totalorder %s61, %s75
      %p77 = scmp.eq.s32.totalorder %s23, 0
      %p78 = por %p76, %p77
      %s80 = sadd.s32 %s79, 1
      %p83 = scmp.eq.s32.totalorder %s17, 1
      %p84 = scmp.ne.s32.totalorder %s79, %s81
      %p85 = scmp.eq.s32.totalorder %s17, 0
      %p86 = por %p84, %p85
      %p87 = scmp.ne.s32.totalorder %s79, %s81
      %p88 = scmp.eq.s32.totalorder %s22, 1
      %p89 = por %p87, %p88
      %p90 = scmp.ne.s32.totalorder %s81, %s82
      %p91 = scmp.eq.s32.totalorder %s22, 0
      %p92 = por %p90, %p91
      %p93 = scmp.ne.s32.totalorder %s81, %s82
      %p94 = scmp.eq.s32.totalorder %s23, 1
      %p95 = por %p93, %p94
      %p97 = scmp.ne.s32.totalorder %s82, %s96
      %p98 = scmp.eq.s32.totalorder %s23, 0
      %p99 = por %p97, %p98
      %s100 = ssub.s32 %s25, %s32
      %p101 = scmp.eq.s32.totalorder %s100, 0
      %s103 = sadd.s32 %s102, 1
      %s104 = scalar_select %p101, %s102, %s103
      %p107 = pneg %p101
      %p108 = scmp.eq.s32.totalorder %s17, 1
      %p109 = por %p107, %p108
      %p110 = scmp.ne.s32.totalorder %s102, %s105
      %p111 = scmp.eq.s32.totalorder %s17, 0
      %p112 = por %p110, %p111
      %p113 = scmp.ne.s32.totalorder %s102, %s105
      %p114 = scmp.eq.s32.totalorder %s22, 1
      %p115 = por %p113, %p114
      %p116 = scmp.ne.s32.totalorder %s105, %s106
      %p117 = scmp.eq.s32.totalorder %s22, 0
      %p118 = por %p116, %p117
      %p119 = scmp.ne.s32.totalorder %s105, %s106
      %p120 = scmp.eq.s32.totalorder %s23, 1
      %p121 = por %p119, %p120
      %p123 = scmp.ne.s32.totalorder %s106, %s122
      %p124 = scmp.eq.s32.totalorder %s23, 0
      %p125 = por %p123, %p124
      %s126 = smul.u32 %s25, %s24
      %s127 = smul.u32 %s32, %s36
      %s128 = ssub.s32 %s126, %s127
      %p129 = scmp.eq.s32.totalorder %s128, 0
      %s131 = sadd.s32 %s130, 1
      %s132 = scalar_select %p129, %s130, %s131
      %p135 = pneg %p129
      %p136 = scmp.eq.s32.totalorder %s17, 1
      %p137 = por %p135, %p136
      %p138 = scmp.ne.s32.totalorder %s130, %s133
      %p139 = scmp.eq.s32.totalorder %s17, 0
      %p140 = por %p138, %p139
      %p141 = scmp.ne.s32.totalorder %s130, %s133
      %p142 = scmp.eq.s32.totalorder %s22, 1
      %p143 = por %p141, %p142
      %p144 = scmp.ne.s32.totalorder %s133, %s134
      %p145 = scmp.eq.s32.totalorder %s22, 0
      %p146 = por %p144, %p145
      %p147 = scmp.ne.s32.totalorder %s133, %s134
      %p148 = scmp.eq.s32.totalorder %s23, 1
      %p149 = por %p147, %p148
      %p151 = scmp.ne.s32.totalorder %s134, %s150
      %p152 = scmp.eq.s32.totalorder %s23, 0
      %p153 = por %p151, %p152
      %p154 = scmp.le.s32.totalorder 1, %s17
      %p155 = scmp.lt.s32.totalorder %s17, 3
      %p156 = pnand %p154, %p155
      %p157 = pneg %p156
      // Predicated region
      $region9: #{tpu_custom_call.1} parent=5 // pred_check
        _
      $region10: #{tpu_custom_call.1} parent=5 // pred_check_branch
        %159 = sbr.rel (%p156) target = $region12
      $region11: #{tpu_custom_call.1} parent=5 // pred_region
        %s160 = ssub.s32 %s17, 1
        // Predicated region
        $region13: #{tpu_custom_call.1} parent=11 // pred_check
          %p161 = pneg %p50
        $region14: #{tpu_custom_call.1} parent=11 // pred_check_branch
          %163 = sbr.rel (%p161) target = $region16
        $region15: #{tpu_custom_call.1} parent=11 // pred_region
          %165 = vsyncadd [#allocation7], 0
          %s167 = sshll.u32 %s0, 4
          %s168 = int_to_ptr.hbm [resolvable:$true] %s167
          %170 = dma.hbm_to_smem %s168, 64, [#allocation4], [#allocation7]
        $region16: #{tpu_custom_call.1} parent=11 // pred_fallthru
          _
        // Predicated region
        $region17: #{tpu_custom_call.1} parent=11 // pred_check
          %p171 = pneg %p71
        $region18: #{tpu_custom_call.1} parent=11 // pred_check_branch
          %173 = sbr.rel (%p171) target = $region20
        $region19: #{tpu_custom_call.1} parent=11 // pred_region
          %175 = vsyncadd [#allocation10], 0
          %s177 = sshll.u32 %s1, 4
          %s178 = int_to_ptr.hbm [resolvable:$true] %s177
          %180 = dma.hbm_to_smem %s178, 16, [#allocation9], [#allocation10]
        $region20: #{tpu_custom_call.1} parent=11 // pred_fallthru
          _
        // Predicated region
        $region21: #{tpu_custom_call.1} parent=11 // pred_check
          %p181 = pneg %p92
        $region22: #{tpu_custom_call.1} parent=11 // pred_check_branch
          %183 = sbr.rel (%p181) target = $region24
        $region23: #{tpu_custom_call.1} parent=11 // pred_region
          %185 = vsyncadd [#allocation8], 0
          %s187 = sshll.u32 %s2, 4
          %s188 = int_to_ptr.vmem [resolvable:$true] %s187
          %190 = dma.vmem_to_smem %s188, 16, [#allocation11], [#allocation8]
        $region24: #{tpu_custom_call.1} parent=11 // pred_fallthru
          _
        // Predicated region
        $region25: #{tpu_custom_call.1} parent=11 // pred_check
          %p191 = pneg %p118
        $region26: #{tpu_custom_call.1} parent=11 // pred_check_branch
          %193 = sbr.rel (%p191) target = $region28
        $region27: #{tpu_custom_call.1} parent=11 // pred_region
          %s194 = smul.u32 2, %s27
          %196 = vsyncadd [#allocation5], 0
          %s197 = smul.addr %s194, 8
          %s198 = scalar_lea.hbm %s3, %s197
          %s200 = sshll.u32 %s198, 4
          %s201 = int_to_ptr.hbm [resolvable:$true] %s200
          %s202 = sshll.u32 [#allocation12], 4
          %s203 = int_to_ptr.vmem [resolvable:$true] %s202
          %205 = dma.hbm_to_vmem [thread:$0]  %s201, 256, %s203, [#allocation5]
        $region28: #{tpu_custom_call.1} parent=11 // pred_fallthru
          _
      $region12: #{tpu_custom_call.1} parent=5 // pred_fallthru
        _
      %p206 = scmp.lt.s32.totalorder %s17, 2
      // Predicated region
      $region29: #{tpu_custom_call.1} parent=5 // pred_check
        %p207 = pneg %p206
      $region30: #{tpu_custom_call.1} parent=5 // pred_check_branch
        %209 = sbr.rel (%p207) target = $region32
      $region31: #{tpu_custom_call.1} parent=5 // pred_region
        _
      $region32: #{tpu_custom_call.1} parent=5 // pred_fallthru
        _
      %p210 = scmp.le.s32.totalorder 1, %s17
      %p211 = scmp.lt.s32.totalorder %s17, 3
      %p212 = pnand %p210, %p211
      %p213 = pneg %p212
      // Predicated region
      $region33: #{tpu_custom_call.1} parent=5 // pred_check
        _
      $region34: #{tpu_custom_call.1} parent=5 // pred_check_branch
        %215 = sbr.rel (%p212) target = $region36
      $region35: #{tpu_custom_call.1} parent=5 // pred_region
        %s216 = ssub.s32 %s17, 1
        // Predicated region
        $region37: #{tpu_custom_call.1} parent=35 // pred_check
          %p217 = pneg %p50
        $region38: #{tpu_custom_call.1} parent=35 // pred_check_branch
          %219 = sbr.rel (%p217) target = $region40
        $region39: #{tpu_custom_call.1} parent=35 // pred_region
          %221 = dma.done [#allocation7], 64
        $region40: #{tpu_custom_call.1} parent=35 // pred_fallthru
          _
        // Predicated region
        $region41: #{tpu_custom_call.1} parent=35 // pred_check
          %p222 = pneg %p71
        $region42: #{tpu_custom_call.1} parent=35 // pred_check_branch
          %224 = sbr.rel (%p222) target = $region44
        $region43: #{tpu_custom_call.1} parent=35 // pred_region
          %226 = dma.done [#allocation10], 16
        $region44: #{tpu_custom_call.1} parent=35 // pred_fallthru
          _
        // Predicated region
        $region45: #{tpu_custom_call.1} parent=35 // pred_check
          %p227 = pneg %p92
        $region46: #{tpu_custom_call.1} parent=35 // pred_check_branch
          %229 = sbr.rel (%p227) target = $region48
        $region47: #{tpu_custom_call.1} parent=35 // pred_region
          %231 = dma.done [#allocation8], 16
        $region48: #{tpu_custom_call.1} parent=35 // pred_fallthru
          _
        // Predicated region
        $region49: #{tpu_custom_call.1} parent=35 // pred_check
          %p232 = pneg %p118
        $region50: #{tpu_custom_call.1} parent=35 // pred_check_branch
          %234 = sbr.rel (%p232) target = $region52
        $region51: #{tpu_custom_call.1} parent=35 // pred_region
          %236 = dma.done [#allocation5], 256
        $region52: #{tpu_custom_call.1} parent=35 // pred_fallthru
          _
        %237 = sfence
        %p238 = pneg %p50
        %p239 = pneg %p47
        %p240 = pneg %p71
        %p241 = pneg %p68
        %p242 = pneg %p92
        %p243 = pneg %p89
        %p244 = pneg %p118
        %p245 = pneg %p115
        %p246 = pneg %p146
        %p247 = pneg %p143
        %s248 = sand.u32 %s133, 1
        %s249 = scalar_lea.sflag [#allocation6], %s248
        %s250 = sand.u32 %s133, 1
        %s251 = smul.addr %s250, 16
        %s252 = scalar_lea.vmem [#allocation13], %s251
        %s253 = smul.u32 2, %s27
        %s254 = smul.u32 %s27, %s26
        %s255 = smul.u32 2, %s254
        %s256 = sld [smem:[#allocation4]]
        %s257 = sld [smem:[#allocation4 + $0x1]]
        %s258 = sld [smem:[#allocation4 + $0x2]]
        %s259 = sld [smem:[#allocation4 + $0x80]]
        %s260 = sld [smem:[#allocation4 + $0x81]]
        %s261 = sld [smem:[#allocation4 + $0x82]]
        %s262 = sld [smem:[#allocation4 + $0x100]]
        %s263 = sld [smem:[#allocation4 + $0x101]]
        %s264 = sld [smem:[#allocation4 + $0x102]]
        %p265 = scmp.eq.s32.totalorder %s26, 0
        %p266 = scmp.eq.s32.totalorder %s27, 0
        %p267 = pnand %p265, %p266
        %p268 = pneg %p267
        // Predicated region
        $region53: #{tpu_custom_call.1} parent=35 // pred_check
          _
        $region54: #{tpu_custom_call.1} parent=35 // pred_check_branch
          %270 = sbr.rel (%p267) target = $region56
        $region55: #{tpu_custom_call.1} parent=35 // pred_region
          %271 = vst [vmem:[#allocation2] sm:$0x3f] 0.0
          %272 = vst [vmem:[#allocation2 + $0x8] sm:$0x3f] 0.0
        $region56: #{tpu_custom_call.1} parent=35 // pred_fallthru
          _
        // Predicated region
        $region57: #{tpu_custom_call.1} parent=35 // pred_check
          %p273 = pneg %p265
        $region58: #{tpu_custom_call.1} parent=35 // pred_check_branch
          %275 = sbr.rel (%p273) target = $region60
        $region59: #{tpu_custom_call.1} parent=35 // pred_region
          %v276 = vld [vmem:[#allocation12] sm:$0x3f]
          %v277 = vld [vmem:[#allocation12 + $0x8] sm:$0x3f]
          %v278 = vstv %s256
          %v279 = vmul.f32 %v278, %v276
          %v280 = vmul.f32 %v278, %v277
          %v281 = vstv %s257
          %v282 = vmul.f32 %v281, %v276
          %v283 = vmul.f32 %v281, %v277
          %v286 = vrot.slane %v282, 1
          %v287 = vrot.slane %v283, 1
          %v290 = vadd.f32 %v279, %v286
          %v291 = vadd.f32 %v280, %v287
          %v292 = vstv %s258
          %v293 = vmul.f32 %v292, %v276
          %v294 = vmul.f32 %v292, %v277
          %v297 = vrot.slane %v293, 2
          %v298 = vrot.slane %v294, 2
          %v301 = vadd.f32 %v290, %v297
          %v302 = vadd.f32 %v291, %v298
          %v303 = vstv %s259
          %v304 = vmul.f32 %v303, %v276
          %v305 = vmul.f32 %v303, %v277
          %v306 = vstv %s260
          %v307 = vmul.f32 %v306, %v276
          %v308 = vmul.f32 %v306, %v277
          %v311 = vrot.slane %v307, 1
          %v312 = vrot.slane %v308, 1
          %v315 = vadd.f32 %v304, %v311
          %v316 = vadd.f32 %v305, %v312
          %v317 = vstv %s261
          %v318 = vmul.f32 %v317, %v276
          %v319 = vmul.f32 %v317, %v277
          %v322 = vrot.slane %v318, 2
          %v323 = vrot.slane %v319, 2
          %v326 = vadd.f32 %v315, %v322
          %v327 = vadd.f32 %v316, %v323
          %v328 = vstv %s262
          %v329 = vmul.f32 %v328, %v276
          %v330 = vmul.f32 %v328, %v277
          %v331 = vstv %s263
          %v332 = vmul.f32 %v331, %v276
          %v333 = vmul.f32 %v331, %v277
          %v336 = vrot.slane %v332, 1
          %v337 = vrot.slane %v333, 1
          %v340 = vadd.f32 %v329, %v336
          %v341 = vadd.f32 %v330, %v337
          %v342 = vstv %s264
          %v343 = vmul.f32 %v342, %v276
          %v344 = vmul.f32 %v342, %v277
          %v347 = vrot.slane %v343, 2
          %v348 = vrot.slane %v344, 2
          %v351 = vadd.f32 %v340, %v347
          %v352 = vadd.f32 %v341, %v348
          %v353 = vmul.f32 %v301, %v301
          %v354 = vmul.f32 %v302, %v302
          %v357 = vrot.slane %v301, 3
          %v358 = vrot.slane %v302, 3
          %v361 = vadd.f32 %v301, %v357
          %v362 = vadd.f32 %v302, %v358
          %v365 = vrot.slane %v353, 3
          %v366 = vrot.slane %v354, 3
          %v369 = vadd.f32 %v353, %v365
          %v370 = vadd.f32 %v354, %v366
          %v371 = vmul.f32 %v326, %v326
          %v372 = vmul.f32 %v327, %v327
          %v375 = vrot.slane %v326, 3
          %v376 = vrot.slane %v327, 3
          %v379 = vadd.f32 %v326, %v375
          %v380 = vadd.f32 %v327, %v376
          %v383 = vrot.slane %v371, 3
          %v384 = vrot.slane %v372, 3
          %v387 = vadd.f32 %v371, %v383
          %v388 = vadd.f32 %v372, %v384
          %v389 = vmul.f32 %v351, %v351
          %v390 = vmul.f32 %v352, %v352
          %v393 = vrot.slane %v351, 3
          %v394 = vrot.slane %v352, 3
          %v397 = vadd.f32 %v351, %v393
          %v398 = vadd.f32 %v352, %v394
          %v401 = vrot.slane %v389, 3
          %v402 = vrot.slane %v390, 3
          %v405 = vadd.f32 %v389, %v401
          %v406 = vadd.f32 %v390, %v402
          %v407 = vld [vmem:[#allocation2] sm:$0x3f]
          %v408 = vld [vmem:[#allocation2 + $0x8] sm:$0x3f]
          %v411 = vrot.slane %v379, 7
          %v412 = vrot.slane %v380, 7
          %v417 = vrot.slane %v397, 6
          %v418 = vrot.slane %v398, 6
          %v423 = vrot.slane %v369, 5
          %v424 = vrot.slane %v370, 5
          %v429 = vrot.slane %v387, 4
          %v430 = vrot.slane %v388, 4
          %v435 = vrot.slane %v405, 3
          %v436 = vrot.slane %v406, 3
          %vm439 = vcmask 1040384
          %v440 = vsel %vm439, %v361, %v411
          %v441 = vsel %vm439, %v362, %v412
          %vm442 = vcmask 1041408
          %v443 = vsel %vm442, %v440, %v417
          %v444 = vsel %vm442, %v441, %v418
          %vm445 = vcmask 1042432
          %v446 = vsel %vm445, %v443, %v423
          %v447 = vsel %vm445, %v444, %v424
          %vm448 = vcmask 1043456
          %v449 = vsel %vm448, %v446, %v429
          %v450 = vsel %vm448, %v447, %v430
          %vm451 = vcmask 1044480
          %v452 = vsel %vm451, %v449, %v435
          %v453 = vsel %vm451, %v450, %v436
          %v454 = vadd.f32 %v407, %v452
          %v455 = vadd.f32 %v408, %v453
          %456 = vst [vmem:[#allocation2] sm:$0x3f] %v454
          %457 = vst [vmem:[#allocation2 + $0x8] sm:$0x3f] %v455
        $region60: #{tpu_custom_call.1} parent=35 // pred_fallthru
          _
        %p458 = scmp.eq.s32.totalorder %s26, 1
        %p459 = pnand %p458, %p266
        %p460 = pneg %p459
        // Predicated region
        $region61: #{tpu_custom_call.1} parent=35 // pred_check
          _
        $region62: #{tpu_custom_call.1} parent=35 // pred_check_branch
          %462 = sbr.rel (%p459) target = $region64
        $region63: #{tpu_custom_call.1} parent=35 // pred_region
          %v463 = vld [vmem:[#allocation2] ss:$8 sm:$0x3]
          %s464 = scalar_lea.vmem [#allocation2], 3
          %v465 = vld [vmem:[%s464] ss:$8 sm:$0x3]
          %v467 = vperm.slane %v463, 0
          %v468 = vperm.slane %v463, 1
          %vm471 = vcmask 1040384
          %v472 = vsel %vm471, %v467, 0.0
          %v473 = vsel %vm471, %v468, 0.0
          %v474 = vadd.f32 %v472, %v473
          %475 = vadd.xlane.f32.xlu0 %v474
          %v476 = vpop.xlane.xlu0 %475
          %v477 = vmul.f32 %v476, 0.001953125
          %v479 = vperm.slane %v465, 0
          %v480 = vperm.slane %v465, 1
          %v483 = vsel %vm471, %v479, 0.0
          %v484 = vsel %vm471, %v480, 0.0
          %v485 = vadd.f32 %v483, %v484
          %486 = vadd.xlane.f32.xlu0 %v485
          %v487 = vpop.xlane.xlu0 %486
          %v488 = vmul.f32 %v487, 0.001953125
          %v489 = vmul.f32 %v477, %v477
          %v490 = vsub.f32 %v488, %v489
          %v491 = vmax.f32 %v490, 0.0
          %v492 = vadd.f32 %v491, 1e-05
          %v493 = vrsqrt.pop %v492
          %v494 = vmul.f32 %v493, %v492
          %v495 = vmul.f32 %v494, %v493
          %v496 = vmul.f32 0.5, %v495
          %v497 = vsub.f32 1.5, %v496
          %v498 = vmul.f32 %v493, %v497
          %vm499 = vweird.f32 %v492
          %vm500 = vweird.f32 %v493
          %vm501 = vmor %vm499, %vm500
          %v502 = vsel %vm501, %v493, %v498
          %s503 = sld [smem:[#allocation9]]
          %v504 = vstv %s503
          %v505 = vmul.f32 %v502, %v504
          %s506 = sld [smem:[#allocation11]]
          %v507 = vmul.f32 %v477, %v505
          %v508 = vstv %s506
          %v509 = vsub.f32 %v508, %v507
          %vm510 = vcmask 0
          %511 = vst.msk [vmem:[#allocation3] sm:$0x1] %vm510, %v505
          %512 = vst.msk [vmem:[#allocation3 + $0x3] sm:$0x1] %vm510, %v509
          %s513 = scalar_lea.vmem [#allocation2], 1
          %v514 = vld [vmem:[%s513] ss:$8 sm:$0x3]
          %s515 = scalar_lea.vmem [#allocation2], 4
          %v516 = vld [vmem:[%s515] ss:$8 sm:$0x3]
          %v518 = vperm.slane %v514, 0
          %v519 = vperm.slane %v514, 1
          %v522 = vsel %vm471, %v518, 0.0
          %v523 = vsel %vm471, %v519, 0.0
          %v524 = vadd.f32 %v522, %v523
          %525 = vadd.xlane.f32.xlu0 %v524
          %v526 = vpop.xlane.xlu0 %525
          %v527 = vmul.f32 %v526, 0.001953125
          %v529 = vperm.slane %v516, 0
          %v530 = vperm.slane %v516, 1
          %v533 = vsel %vm471, %v529, 0.0
          %v534 = vsel %vm471, %v530, 0.0
          %v535 = vadd.f32 %v533, %v534
          %536 = vadd.xlane.f32.xlu0 %v535
          %v537 = vpop.xlane.xlu0 %536
          %v538 = vmul.f32 %v537, 0.001953125
          %v539 = vmul.f32 %v527, %v527
          %v540 = vsub.f32 %v538, %v539
          %v541 = vmax.f32 %v540, 0.0
          %v542 = vadd.f32 %v541, 1e-05
          %v543 = vrsqrt.pop %v542
          %v544 = vmul.f32 %v543, %v542
          %v545 = vmul.f32 %v544, %v543
          %v546 = vmul.f32 0.5, %v545
          %v547 = vsub.f32 1.5, %v546
          %v548 = vmul.f32 %v543, %v547
          %vm549 = vweird.f32 %v542
          %vm550 = vweird.f32 %v543
          %vm551 = vmor %vm549, %vm550
          %v552 = vsel %vm551, %v543, %v548
          %s553 = sld [smem:[#allocation9 + $0x1]]
          %v554 = vstv %s553
          %v555 = vmul.f32 %v552, %v554
          %s556 = sld [smem:[#allocation11 + $0x1]]
          %v557 = vmul.f32 %v527, %v555
          %v558 = vstv %s556
          %v559 = vsub.f32 %v558, %v557
          %560 = vst.msk [vmem:[#allocation3 + $0x1] sm:$0x1] %vm510, %v555
          %561 = vst.msk [vmem:[#allocation3 + $0x4] sm:$0x1] %vm510, %v559
          %s562 = scalar_lea.vmem [#allocation2], 2
          %v563 = vld [vmem:[%s562] ss:$8 sm:$0x3]
          %s564 = scalar_lea.vmem [#allocation2], 5
          %v565 = vld [vmem:[%s564] ss:$8 sm:$0x3]
          %v567 = vperm.slane %v563, 0
          %v568 = vperm.slane %v563, 1
          %v571 = vsel %vm471, %v567, 0.0
          %v572 = vsel %vm471, %v568, 0.0
          %v573 = vadd.f32 %v571, %v572
          %574 = vadd.xlane.f32.xlu0 %v573
          %v575 = vpop.xlane.xlu0 %574
          %v576 = vmul.f32 %v575, 0.001953125
          %v578 = vperm.slane %v565, 0
          %v579 = vperm.slane %v565, 1
          %v582 = vsel %vm471, %v578, 0.0
          %v583 = vsel %vm471, %v579, 0.0
          %v584 = vadd.f32 %v582, %v583
          %585 = vadd.xlane.f32.xlu0 %v584
          %v586 = vpop.xlane.xlu0 %585
          %v587 = vmul.f32 %v586, 0.001953125
          %v588 = vmul.f32 %v576, %v576
          %v589 = vsub.f32 %v587, %v588
          %v590 = vmax.f32 %v589, 0.0
          %v591 = vadd.f32 %v590, 1e-05
          %v592 = vrsqrt.pop %v591
          %v593 = vmul.f32 %v592, %v591
          %v594 = vmul.f32 %v593, %v592
          %v595 = vmul.f32 0.5, %v594
          %v596 = vsub.f32 1.5, %v595
          %v597 = vmul.f32 %v592, %v596
          %vm598 = vweird.f32 %v591
          %vm599 = vweird.f32 %v592
          %vm600 = vmor %vm598, %vm599
          %v601 = vsel %vm600, %v592, %v597
          %s602 = sld [smem:[#allocation9 + $0x2]]
          %v603 = vstv %s602
          %v604 = vmul.f32 %v601, %v603
          %s605 = sld [smem:[#allocation11 + $0x2]]
          %v606 = vmul.f32 %v576, %v604
          %v607 = vstv %s605
          %v608 = vsub.f32 %v607, %v606
          %609 = vst.msk [vmem:[#allocation3 + $0x2] sm:$0x1] %vm510, %v604
          %610 = vst.msk [vmem:[#allocation3 + $0x5] sm:$0x1] %vm510, %v608
        $region64: #{tpu_custom_call.1} parent=35 // pred_fallthru
          _
        // Predicated region
        $region65: #{tpu_custom_call.1} parent=35 // pred_check
          %p611 = pneg %p458
        $region66: #{tpu_custom_call.1} parent=35 // pred_check_branch
          %613 = sbr.rel (%p611) target = $region68
        $region67: #{tpu_custom_call.1} parent=35 // pred_region
          %v614 = vld [vmem:[#allocation3] sm:$0x1]
          %v615 = vld [vmem:[#allocation3 + $0x1] sm:$0x1]
          %v616 = vld [vmem:[#allocation3 + $0x2] sm:$0x1]
          %v617 = vld [vmem:[#allocation3 + $0x3] sm:$0x1]
          %v618 = vld [vmem:[#allocation3 + $0x4] sm:$0x1]
          %v619 = vld [vmem:[#allocation3 + $0x5] sm:$0x1]
          %v621 = vrot.slane %v615, 7
          %v624 = vrot.slane %v616, 6
          %v627 = vrot.slane %v614, 5
          %v629 = vrot.slane %v615, 4
          %v631 = vrot.slane %v616, 3
          %vm633 = vcmask 1040384
          %v634 = vsel %vm633, %v614, %v621
          %vm635 = vcmask 1041408
          %v636 = vsel %vm635, %v634, %v624
          %vm637 = vcmask 1042432
          %v638 = vsel %vm637, %v636, %v627
          %vm639 = vcmask 1043456
          %v640 = vsel %vm639, %v638, %v629
          %vm641 = vcmask 1044480
          %v642 = vsel %vm641, %v640, %v631
          %v644 = vrot.slane %v618, 7
          %v647 = vrot.slane %v619, 6
          %v650 = vrot.slane %v617, 5
          %v652 = vrot.slane %v618, 4
          %v654 = vrot.slane %v619, 3
          %v656 = vsel %vm633, %v617, %v644
          %v657 = vsel %vm635, %v656, %v647
          %v658 = vsel %vm637, %v657, %v650
          %v659 = vsel %vm639, %v658, %v652
          %v660 = vsel %vm641, %v659, %v654
          %v661 = vld [vmem:[#allocation12] sm:$0x3f]
          %v662 = vld [vmem:[#allocation12 + $0x8] sm:$0x3f]
          %v663 = vstv %s256
          %v664 = vmul.f32 %v663, %v661
          %v665 = vmul.f32 %v663, %v662
          %v666 = vstv %s257
          %v667 = vmul.f32 %v666, %v661
          %v668 = vmul.f32 %v666, %v662
          %v671 = vrot.slane %v667, 1
          %v672 = vrot.slane %v668, 1
          %v675 = vadd.f32 %v664, %v671
          %v676 = vadd.f32 %v665, %v672
          %v677 = vstv %s258
          %v678 = vmul.f32 %v677, %v661
          %v679 = vmul.f32 %v677, %v662
          %v682 = vrot.slane %v678, 2
          %v683 = vrot.slane %v679, 2
          %v686 = vadd.f32 %v675, %v682
          %v687 = vadd.f32 %v676, %v683
          %v688 = vstv %s259
          %v689 = vmul.f32 %v688, %v661
          %v690 = vmul.f32 %v688, %v662
          %v691 = vstv %s260
          %v692 = vmul.f32 %v691, %v661
          %v693 = vmul.f32 %v691, %v662
          %v696 = vrot.slane %v692, 1
          %v697 = vrot.slane %v693, 1
          %v700 = vadd.f32 %v689, %v696
          %v701 = vadd.f32 %v690, %v697
          %v702 = vstv %s261
          %v703 = vmul.f32 %v702, %v661
          %v704 = vmul.f32 %v702, %v662
          %v707 = vrot.slane %v703, 2
          %v708 = vrot.slane %v704, 2
          %v711 = vadd.f32 %v700, %v707
          %v712 = vadd.f32 %v701, %v708
          %v713 = vstv %s262
          %v714 = vmul.f32 %v713, %v661
          %v715 = vmul.f32 %v713, %v662
          %v716 = vstv %s263
          %v717 = vmul.f32 %v716, %v661
          %v718 = vmul.f32 %v716, %v662
          %v721 = vrot.slane %v717, 1
          %v722 = vrot.slane %v718, 1
          %v725 = vadd.f32 %v714, %v721
          %v726 = vadd.f32 %v715, %v722
          %v727 = vstv %s264
          %v728 = vmul.f32 %v727, %v661
          %v729 = vmul.f32 %v727, %v662
          %v732 = vrot.slane %v728, 2
          %v733 = vrot.slane %v729, 2
          %v736 = vadd.f32 %v725, %v732
          %v737 = vadd.f32 %v726, %v733
          %v740 = vrot.slane %v711, 7
          %v741 = vrot.slane %v712, 7
          %v746 = vrot.slane %v736, 6
          %v747 = vrot.slane %v737, 6
          %v750 = vsel %vm633, %v686, %v740
          %v751 = vsel %vm633, %v687, %v741
          %v752 = vsel %vm635, %v750, %v746
          %v753 = vsel %vm635, %v751, %v747
          %v754 = vsel %vm637, %v752, %v686
          %v755 = vsel %vm637, %v753, %v687
          %v756 = vsel %vm639, %v754, %v740
          %v757 = vsel %vm639, %v755, %v741
          %v758 = vsel %vm641, %v756, %v746
          %v759 = vsel %vm641, %v757, %v747
          %761 = vset.pattern.permute.xlu0 0
          %762 = vperm.xlu0 %761, %v642
          %v763 = vpop.permute.xlu0 %762
          %v765 = vmul.f32 %v758, %v763
          %v766 = vmul.f32 %v759, %v763
          %768 = vset.pattern.permute.xlu0 0
          %769 = vperm.xlu0 %768, %v660
          %v770 = vpop.permute.xlu0 %769
          %v772 = vadd.f32 %v765, %v770
          %v773 = vadd.f32 %v766, %v770
          %774 = vst [vmem:[%s252] sm:$0x3f] %v772
          %775 = vst [vmem:[%s252 + $0x8] sm:$0x3f] %v773
        $region68: #{tpu_custom_call.1} parent=35 // pred_fallthru
          _
        %s776 = sand.u32 %s133, 1
        %s777 = scalar_lea.sflag [#allocation6], %s776
        %s778 = sand.u32 %s133, 1
        %s779 = smul.addr %s778, 16
        %s780 = scalar_lea.vmem [#allocation13], %s779
        // Predicated region
        $region69: #{tpu_custom_call.1} parent=35 // pred_check
          %p781 = pneg %p143
        $region70: #{tpu_custom_call.1} parent=35 // pred_check_branch
          %783 = sbr.rel (%p781) target = $region72
        $region71: #{tpu_custom_call.1} parent=35 // pred_region
          %s784 = smul.u32 %s27, %s26
          %s785 = smul.u32 2, %s784
          %787 = vsyncadd %s777, 0
          %s788 = smul.addr %s785, 8
          %s789 = scalar_lea.hbm %s4, %s788
          %s791 = sshll.u32 %s780, 4
          %s792 = int_to_ptr.vmem [resolvable:$true] %s791
          %s793 = sshll.u32 %s789, 4
          %s794 = int_to_ptr.hbm [resolvable:$true] %s793
          %796 = dma.vmem_to_hbm [thread:$0]  %s792, 256, %s794, %s777
        $region72: #{tpu_custom_call.1} parent=35 // pred_fallthru
          _
      $region36: #{tpu_custom_call.1} parent=5 // pred_fallthru
        _
      %p797 = scmp.le.s32.totalorder 2, %s17
      // Predicated region
      $region73: #{tpu_custom_call.1} parent=5 // pred_check
        %p798 = pneg %p797
      $region74: #{tpu_custom_call.1} parent=5 // pred_check_branch
        %800 = sbr.rel (%p798) target = $region76
      $region75: #{tpu_custom_call.1} parent=5 // pred_region
        %s801 = ssub.s32 %s17, 2
        // Predicated region
        $region77: #{tpu_custom_call.1} parent=75 // pred_check
          %p802 = pneg %p149
        $region78: #{tpu_custom_call.1} parent=75 // pred_check_branch
          %804 = sbr.rel (%p802) target = $region80
        $region79: #{tpu_custom_call.1} parent=75 // pred_region
          %s805 = sand.u32 %s134, 1
          %s806 = scalar_lea.sflag [#allocation6], %s805
          %s807 = sand.u32 %s134, 1
          %s808 = smul.addr %s807, 16
          %s809 = scalar_lea.vmem [#allocation13], %s808
          %811 = dma.done %s806, 256
        $region80: #{tpu_custom_call.1} parent=75 // pred_fallthru
          _
      $region76: #{tpu_custom_call.1} parent=5 // pred_fallthru
        _
    $region6: #{tpu_custom_call.1} parent=1 // loop_footer
      %s21 = sadd.s32 1, %s17
    $region7: #{tpu_custom_call.1} parent=1 // loop_footer_branch
      %16 = sbr.rel target = $region3
    $region8: #{tpu_custom_call.1} parent=1 // loop_exit
      _
    %812 = vsyncpa [#allocation5], 1
    %s813 = scalar_lea.sflag [#allocation5], 1
    %814 = vsyncpa %s813, 1
    %815 = vsyncpa [#allocation6], 1
    %s816 = scalar_lea.sflag [#allocation6], 1
    %817 = vsyncpa %s816, 1
    %818 = vsyncpa [#allocation7], 1
    %s819 = scalar_lea.sflag [#allocation7], 1
    %820 = vsyncpa %s819, 1
    %821 = vsyncpa [#allocation10], 1
    %822 = vsyncpa [#allocation8], 1
    %s823 = scalar_lea.sflag [#allocation8], 1
    %824 = vsyncpa %s823, 1

</llo_original>
